<compile_context>
chip_gen: v5e
topology: v5e:2x2
jax: 0.10.0
libtpu: 0.0.40
codegen_flags: <defaults>
</compile_context>

<pallas_src>
import numpy as np
import jax
import jax.numpy as jnp
from jax.experimental import pallas as pl
from jax.experimental.pallas import tpu as pltpu


def ggd_kernel(pos_ref, wc_ref, bc_ref, mask_ref, a1_ref, gsum_ref, out_ref):
    """One row-tile of the GGD forward.

       h   = PReLU(pos_tile @ [W1 | W1_perm] + [b1 | b1])          (TILE_N, 2H)
       out = [sum(h[:, :H], 1) ; sum(h[:, H:], 1)] + gsum          (2, TILE_N)

    gsum = sum(PReLU(mean(node_emb) @ W2 + b2)) is precomputed in XLA and
    arrives as an SMEM scalar; (h+g).sum(1) == h.sum(1) + g.sum().
    """
    a1 = a1_ref[0, 0]          # PReLU slope (SMEM scalar)
    gsum = gsum_ref[0, 0]      # global-readout contribution (SMEM scalar)

    # Fused pos/neg hidden activations: bf16 operands, f32 accumulation.
    h = jnp.dot(pos_ref[...], wc_ref[...],
                preferred_element_type=jnp.float32) + bc_ref[...]
    h = jnp.where(h > 0, h, a1 * h)                       # PReLU (self.mlp), f32

    # Row sums on the MXU, directly in lane-dense (2, TILE_N) orientation:
    # selector row 0 sums the h_pos columns, row 1 the h_neg columns.
    # (contract last dims of both operands -> no explicit transpose of h)
    sc = jax.lax.dot_general(mask_ref[...], h,
                             dimension_numbers=(((1,), (1,)), ((), ())),
                             preferred_element_type=jnp.float32)
    out_ref[...] = sc + gsum


def ggd_forward(pos, mean_emb, perm, w1, b1, a1, w2, b2, a2, *, tile_n=1024):
    """Runs the Pallas kernel and returns logits of shape (1, 2 * Np)."""
    n_pos, d = pos.shape
    h_dim = w1.shape[1]
    h2 = 2 * h_dim
    if n_pos == 0:                       # all nodes at max depth -> empty logits
        return jnp.zeros((1, 0), jnp.float32)

    # Fold the negative-sample column permutation into the weights:
    #   neg @ W1 = pos[:, perm] @ W1 = pos @ W1[argsort(perm)]
    wc = jnp.concatenate([w1, w1[jnp.argsort(perm), :]], axis=1)      # (D, 2H)
    wc = wc.astype(jnp.bfloat16)
    bc = jnp.concatenate([b1, b1], axis=1).astype(jnp.float32)        # (1, 2H)
    # Row-sum selector: [[1..1 0..0], [0..0 1..1]]
    sum_mask = jnp.repeat(jnp.eye(2, dtype=jnp.float32), h_dim, axis=1)  # (2, 2H)

    # Global readout branch hoisted to XLA: a single scalar feeds the kernel.
    g = mean_emb.astype(jnp.float32) @ w2 + b2                        # (1, H)
    g = jnp.where(g > 0, g, a2[0, 0] * g)                             # PReLU
    gsum = jnp.sum(g).reshape(1, 1).astype(jnp.float32)               # (1, 1)

    # Row tiling: multiple of 128 (lane-dense (2, tile_n) output block), large
    # by default, but capped so the grid keeps >=2 steps -> v7x can shard the
    # "parallel" axis over both TensorCores.
    tile_n = max(128, (tile_n // 128) * 128)
    half = ((pl.cdiv(n_pos, 2) + 127) // 128) * 128
    tile_n = min(tile_n, max(128, half))
    grid_n = pl.cdiv(n_pos, tile_n)
    n_pad = grid_n * tile_n
    # Invariant: the ragged last input tile reads undefined rows; their results
    # land ONLY in output columns >= n_pos (each column depends solely on its
    # own row via the selector contraction) and are sliced off below.

    pos_bf16 = pos.astype(jnp.bfloat16)   # halves the only pipelined HBM stream

    # VMEM budget derived from actual tile footprint; cap below v7x physical.
    est_bytes = (
        2 * tile_n * d * 2        # pos tile, bf16, double-buffered
        + 2 * d * h2 * 2          # fused Wc, bf16, double-buffered
        + 2 * 1 * h2 * 4          # fused bias, f32, double-buffered
        + 2 * 2 * h2 * 4          # selector mask, f32, double-buffered
        + 2 * 2 * tile_n * 4      # output tile, f32, double-buffered
        + tile_n * h2 * 4         # h intermediate, f32
    )
    vmem_limit = int(min(48 * 1024 * 1024, max(8 * 1024 * 1024, 2 * est_bytes)))
    # TODO(synk): for very large D/H on v7x, single-buffer the grid-invariant
    # Wc/bc/mask blocks (pipeline_mode) to stay inside the 64 MiB VMEM budget.

    out = pl.pallas_call(
        ggd_kernel,
        out_shape=jax.ShapeDtypeStruct((2, n_pad), jnp.float32),
        grid=(grid_n,),
        in_specs=[
            pl.BlockSpec((tile_n, d), lambda i: (i, 0)),       # pos tile (pipelined, bf16)
            pl.BlockSpec((d, h2), lambda i: (0, 0)),           # fused W (bf16)
            pl.BlockSpec((1, h2), lambda i: (0, 0)),           # fused bias (f32)
            pl.BlockSpec((2, h2), lambda i: (0, 0)),           # row-sum selector
            pl.BlockSpec(memory_space=pltpu.MemorySpace.SMEM),  # PReLU slope a1
            pl.BlockSpec(memory_space=pltpu.MemorySpace.SMEM),  # gsum scalar
        ],
        out_specs=pl.BlockSpec((2, tile_n), lambda i: (0, i)),
        compiler_params=pltpu.CompilerParams(
            dimension_semantics=("parallel",),
            vmem_limit_bytes=vmem_limit),
    )(pos_bf16, wc, bc, sum_mask, a1.astype(jnp.float32), gsum)

    # torch.cat((sc_1, sc_2), 1) with sc_* of shape (1, Np)
    return jnp.concatenate([out[0, :n_pos], out[1, :n_pos]])[None, :]


def filter_adj(edge_index_np, edge_attr_np, perm_np, num_nodes):
    """torch_geometric-style filter_adj: keep edges between kept nodes, relabel."""
    mask = -np.ones(num_nodes, dtype=np.int64)
    mask[perm_np] = np.arange(perm_np.shape[0])
    row, col = edge_index_np[0], edge_index_np[1]
    row, col = mask[row], mask[col]
    keep = (row >= 0) & (col >= 0)
    new_edge_index = np.stack([row[keep], col[keep]], axis=0)
    new_edge_attr = None if edge_attr_np is None else edge_attr_np[keep]
    return new_edge_index, new_edge_attr


def tree_pool_forward(input_feature, node_depth, graph_indicator, edge_index,
                      params, edge_attr=None, rng_key=None, readout="mean",
                      tile_n=1024):
    """TreePool.forward.  Returns (outputs_tuple, ret_logits)."""
    # TODO(synk): torch.where-style dynamic node selection has no static-shape
    # Pallas equivalent; it stays as host-side glue (device->host sync here).
    # In production, bucket Np (e.g. next power of two) to avoid per-shape
    # recompiles of the pallas_call.
    node_depth_np = np.asarray(node_depth)
    max_depth = int(node_depth_np.max())
    new_nodes = np.where(node_depth_np < max_depth)[0]            # kept nodes

    pos = input_feature[new_nodes]                                # (Np, D)

    # fresh permutation per call (matches torch.randperm semantics)
    if rng_key is None:
        rng_key = jax.random.PRNGKey(np.random.randint(0, 2**31 - 1))
    perm = jax.random.permutation(rng_key, pos.shape[1])

    # graph readout computed in XLA so the (N, D) matrix never enters VMEM
    if readout == "mean":
        g_emb = jnp.mean(input_feature, axis=0, keepdims=True)
    elif readout == "max":
        g_emb = jnp.max(input_feature, axis=0, keepdims=True)
    elif readout == "sum":
        g_emb = jnp.sum(input_feature, axis=0, keepdims=True)
    else:
        raise ValueError(f"Invalid readout option: {readout}")

    # hot path: GGD mutual layer in the Pallas kernel
    ret = ggd_forward(pos, g_emb.astype(jnp.float32), perm,
                      params["w1"], params["b1"], params["a1"],
                      params["w2"], params["b2"], params["a2"],
                      tile_n=tile_n)

    # graph glue
    edge_index_new, edge_attr_new = filter_adj(
        np.asarray(edge_index),
        None if edge_attr is None else np.asarray(edge_attr),
        new_nodes, num_nodes=int(np.asarray(graph_indicator).shape[0]))

    outputs = (pos,
               jnp.asarray(edge_index_new),
               edge_attr_new,
               graph_indicator[new_nodes],
               node_depth[new_nodes])
    return outputs, ret


def _reference_ggd(pos, neg, node_emb, w1, b1, a1, w2, b2, a2):
    """Plain-JAX reference. Main matmuls use bf16 operands + f32 accumulation
    to mirror the kernel's MXU precision; everything else is f32."""
    def prelu(x, a):
        return jnp.where(x > 0, x, a * x)

    def mm_bf16(x, w):
        return jnp.dot(x.astype(jnp.bfloat16), w.astype(jnp.bfloat16),
                       preferred_element_type=jnp.float32)

    h_pos = prelu(mm_bf16(pos, w1) + b1, a1[0, 0])
    h_neg = prelu(mm_bf16(neg, w1) + b1, a1[0, 0])
    g = prelu(jnp.mean(node_emb, axis=0, keepdims=True) @ w2 + b2, a2[0, 0])
    sc1 = jnp.sum(h_pos + g, axis=1)[None, :]
    sc2 = jnp.sum(h_neg + g, axis=1)[None, :]
    return jnp.concatenate([sc1, sc2], axis=1)


if __name__ == "__main__":
    key = jax.random.PRNGKey(0)
    k1, k2, k3, k4, k5 = jax.random.split(key, 5)

    # small but MXU/lane-aligned shapes: 640 nodes, embed_dim = 128, hidden = 128
    N, D, H = 640, 128, 128

    input_feature = jax.random.normal(k1, (N, D), dtype=jnp.float32)
    # 500 nodes shallower than max depth -> Np = 500 (exercises the ragged tile)
    node_depth = jnp.concatenate([jnp.zeros((250,), jnp.int32),
                                  jnp.ones((250,), jnp.int32),
                                  jnp.full((140,), 2, jnp.int32)])
    graph_indicator = jnp.zeros((N,), dtype=jnp.int32)
    edge_index = jnp.array(
        np.stack([np.arange(1024) % N, (np.arange(1024) * 7 + 3) % N]),
        dtype=jnp.int32)                               # (2, 1024)

    # deterministic MLP parameters (Linear + PReLU, alpha init 0.25)
    params = {
        "w1": jax.random.normal(k2, (D, H), jnp.float32) / np.sqrt(D),
        "b1": jax.random.normal(k3, (1, H), jnp.float32) * 0.1,
        "a1": jnp.full((1, 1), 0.25, jnp.float32),
        "w2": jax.random.normal(k4, (D, H), jnp.float32) / np.sqrt(D),
        "b2": jax.random.normal(k5, (1, H), jnp.float32) * 0.1,
        "a2": jnp.full((1, 1), 0.25, jnp.float32),
    }
    # TODO(synk): params['activation']=='tanh' is stored by TreePool.__init__ but
    # never used in the forward path, so it is not materialized here.

    perm_key = jax.random.PRNGKey(123)
    outputs, ret = tree_pool_forward(input_feature, node_depth, graph_indicator,
                                     edge_index, params, rng_key=perm_key)
    jax.block_until_ready(ret)
    jax.block_until_ready(outputs[0])

    # correctness check against a plain-JAX reference of the GGD branch
    new_nodes = np.where(np.asarray(node_depth) < int(np.asarray(node_depth).max()))[0]
    pos = input_feature[new_nodes]
    perm = jax.random.permutation(perm_key, pos.shape[1])
    neg = pos[:, perm]
    ref = _reference_ggd(pos, neg, input_feature,
                         params["w1"], params["b1"], params["a1"],
                         params["w2"], params["b2"], params["a2"])
    assert ret.shape == (1, 2 * pos.shape[0])
    np.testing.assert_allclose(np.asarray(ret), np.asarray(ref),
                               rtol=2e-2, atol=2e-2)
    print("KERNEL_OK")
</pallas_src>

<mosaic_0001>
module attributes {stable_mosaic.version = 11 : i64} {
  func.func @ggd_kernel(%arg0: i32, %arg1: memref<256x128xbf16, #tpu.memory_space<vmem>>, %arg2: memref<128x256xbf16, #tpu.memory_space<vmem>>, %arg3: memref<1x256xf32, #tpu.memory_space<vmem>>, %arg4: memref<2x256xf32, #tpu.memory_space<vmem>>, %arg5: memref<1x1xf32, #tpu.memory_space<smem>>, %arg6: memref<1x1xf32, #tpu.memory_space<smem>>, %arg7: memref<2x256xf32, #tpu.memory_space<vmem>>) attributes {dimension_semantics = [#tpu.dimension_semantics<parallel>], iteration_bounds = array<i64: 2>, scalar_prefetch = 0 : i64, scratch_operands = 0 : i64, tpu.core_type = #tpu.core_type<tc>, window_params = [{transform_indices = @transform_0, window_bounds = array<i64: 256, 128>}, {pipeline_mode = #tpu.pipeline_mode<synchronous>, transform_indices = @transform_1, window_bounds = array<i64: 128, 256>}, {pipeline_mode = #tpu.pipeline_mode<synchronous>, transform_indices = @transform_2, window_bounds = array<i64: 1, 256>}, {pipeline_mode = #tpu.pipeline_mode<synchronous>, transform_indices = @transform_3, window_bounds = array<i64: 2, 256>}, {transform_indices = @transform_4, window_bounds = array<i64: 1, 1>}, {transform_indices = @transform_5, window_bounds = array<i64: 1, 1>}, {transform_indices = @transform_6, window_bounds = array<i64: 2, 256>}]} {
    %c0 = arith.constant 0 : index
    %c0_0 = arith.constant 0 : index
    %0 = memref.load %arg5[%c0, %c0_0] : memref<1x1xf32, #tpu.memory_space<smem>>
    %c0_1 = arith.constant 0 : index
    %c0_2 = arith.constant 0 : index
    %1 = memref.load %arg6[%c0_1, %c0_2] : memref<1x1xf32, #tpu.memory_space<smem>>
    %c0_3 = arith.constant 0 : index
    %c0_4 = arith.constant 0 : index
    %2 = vector.load %arg1[%c0_3, %c0_4] : memref<256x128xbf16, #tpu.memory_space<vmem>>, vector<256x128xbf16>
    %c0_5 = arith.constant 0 : index
    %c0_6 = arith.constant 0 : index
    %3 = vector.load %arg2[%c0_5, %c0_6] : memref<128x256xbf16, #tpu.memory_space<vmem>>, vector<128x256xbf16>
    %cst = arith.constant dense<0.000000e+00> : vector<256x256xf32>
    %4 = tpu.matmul %2, %3, %cst {dimension_numbers = #tpu.dot_dimension_numbers<[1], [0], [0], [1], [0, 0, 1, 1], [], []>} : vector<256x128xbf16>, vector<128x256xbf16>, vector<256x256xf32> -> vector<256x256xf32>
    %c0_7 = arith.constant 0 : index
    %c0_8 = arith.constant 0 : index
    %5 = vector.load %arg3[%c0_7, %c0_8] : memref<1x256xf32, #tpu.memory_space<vmem>>, vector<1x256xf32>
    %6 = vector.broadcast %5 : vector<1x256xf32> to vector<256x256xf32>
    %7 = arith.addf %4, %6 : vector<256x256xf32>
    %cst_9 = arith.constant 0.000000e+00 : f32
    %8 = vector.broadcast %cst_9 : f32 to vector<256x256xf32>
    %9 = arith.cmpf ogt, %7, %8 : vector<256x256xf32>
    %10 = vector.broadcast %0 : f32 to vector<256x256xf32>
    %11 = arith.mulf %10, %7 : vector<256x256xf32>
    %12 = arith.select %9, %7, %11 : vector<256x256xi1>, vector<256x256xf32>
    %c0_10 = arith.constant 0 : index
    %c0_11 = arith.constant 0 : index
    %13 = vector.load %arg4[%c0_10, %c0_11] : memref<2x256xf32, #tpu.memory_space<vmem>>, vector<2x256xf32>
    %cst_12 = arith.constant dense<0.000000e+00> : vector<2x256xf32>
    %14 = tpu.matmul %13, %12, %cst_12 {dimension_numbers = #tpu.dot_dimension_numbers<[1], [1], [0], [0], [0, 0, 1, 0], [], []>} : vector<2x256xf32>, vector<256x256xf32>, vector<2x256xf32> -> vector<2x256xf32>
    %15 = vector.broadcast %1 : f32 to vector<2x256xf32>
    %16 = arith.addf %14, %15 : vector<2x256xf32>
    %c0_13 = arith.constant 0 : index
    %c0_14 = arith.constant 0 : index
    %17 = vector.load %arg7[%c0_13, %c0_14] : memref<2x256xf32, #tpu.memory_space<vmem>>, vector<2x256xf32>
    tpu.vector_store %arg7[%c0_13, %c0_14], %16 {strides = array<i32>} : memref<2x256xf32, #tpu.memory_space<vmem>>, vector<2x256xf32>,
    return
  }
  func.func @transform_0(%arg0: i32) -> (i32, i32) {
    %c0_i32 = arith.constant 0 : i32
    %c0_i32_0 = arith.constant 0 : i32
    return %arg0, %c0_i32 : i32, i32
  }
  func.func @transform_1(%arg0: i32) -> (i32, i32) {
    %c0_i32 = arith.constant 0 : i32
    %c0_i32_0 = arith.constant 0 : i32
    %c0_i32_1 = arith.constant 0 : i32
    return %c0_i32, %c0_i32_0 : i32, i32
  }
  func.func @transform_2(%arg0: i32) -> (i32, i32) {
    %c0_i32 = arith.constant 0 : i32
    %c0_i32_0 = arith.constant 0 : i32
    %c0_i32_1 = arith.constant 0 : i32
    return %c0_i32, %c0_i32_0 : i32, i32
  }
  func.func @transform_3(%arg0: i32) -> (i32, i32) {
    %c0_i32 = arith.constant 0 : i32
    %c0_i32_0 = arith.constant 0 : i32
    %c0_i32_1 = arith.constant 0 : i32
    return %c0_i32, %c0_i32_0 : i32, i32
  }
  func.func @transform_4(%arg0: i32) -> (i32, i32) {
    %c0_i32 = arith.constant 0 : i32
    %c0_i32_0 = arith.constant 0 : i32
    %c0_i32_1 = arith.constant 0 : i32
    return %c0_i32, %c0_i32_0 : i32, i32
  }
  func.func @transform_5(%arg0: i32) -> (i32, i32) {
    %c0_i32 = arith.constant 0 : i32
    %c0_i32_0 = arith.constant 0 : i32
    %c0_i32_1 = arith.constant 0 : i32
    return %c0_i32, %c0_i32_0 : i32, i32
  }
  func.func @transform_6(%arg0: i32) -> (i32, i32) {
    %c0_i32 = arith.constant 0 : i32
    %c0_i32_0 = arith.constant 0 : i32
    return %c0_i32, %arg0 : i32, i32
  }
}

</mosaic_0001>

<llo_original>
// kernel: tpu_custom_call.1
$region0: #{tpu_custom_call.1}
  #allocation0 [shape = 'u32[]', space=smem, size = 0x4, offset = 0x4, fixed_abs, tag = 'smem constant byte address 0x4 - core index']
  #allocation1 [shape = 'u32[72,128]{1,0:T(1,128)}', space=vmem, size = 0x9000, scoped, tag = 'internal scratch']
  #allocation2 [shape = 'f32[1,1]{1,0:T(1,128)S(6)}', space=smem, size = 0x200, scoped, tag = 'scoped memory for tpu_custom_call.1']
  #allocation3 [shape = 'f32[1,1]{1,0:T(1,128)S(6)}', space=smem, size = 0x200, scoped, tag = 'scoped memory for tpu_custom_call.1']
  %s0 = inlined_call_operand.hbm [shape: bf16[500,128], index: 0, kind: input, shape index: {}]
  %s1 = inlined_call_operand.hbm [shape: bf16[128,256], index: 1, kind: input, shape index: {}]
  %s2 = inlined_call_operand.vmem [shape: f32[1,256], index: 2, kind: input, shape index: {}]
  %s3 = inlined_call_operand.vmem [shape: f32[2,256], index: 3, kind: input, shape index: {}]
  %s4 = inlined_call_operand.<no memory space> [shape: f32[1,1], index: 4, kind: input, shape index: {}]
  %s5 = inlined_call_operand.<no memory space> [shape: f32[1,1], index: 5, kind: input, shape index: {}]
  %s6 = inlined_call_operand.hbm [shape: f32[2,512], index: 6, kind: output, shape index: {}]
  %s7 = sld [smem:[#allocation0]]
  $region65: #{tpu_custom_call.1} parent=0
    _
  %s9 = ssub.s32 1, %s7
  %s10 = scalar_select 0, %s9, %s7
  %11 = sst [smem:[#allocation2]] %s4
  %12 = sst [smem:[#allocation3]] %s5
  $region1: #{tpu_custom_call.1} parent=0
    #allocation4 [shape = 'u8[131072]{0}', space=vmem, size = 0x20000, scoped, tag = 'input window, operand 0']
    #allocation5 [shape = 's32[2]{0}', space=sflag, size = 0x8, scoped, tag = 'scoped memory for tpu_custom_call.1']
    #allocation6 [shape = 's32[2]{0}', space=sflag, size = 0x8, scoped, tag = 'scoped memory for tpu_custom_call.1']
    #allocation7 [shape = 'u8[65536]{0}', space=vmem, size = 0x10000, scoped, tag = 'input window, operand 1, single buffered']
    #allocation8 [shape = 's32[1]{0}', space=sflag, size = 0x4, scoped, tag = 'scoped memory for tpu_custom_call.1']
    #allocation9 [shape = 'u8[4096]{0}', space=vmem, size = 0x1000, scoped, tag = 'output window, operand 0']
    %13 = vsyncpa [#allocation5], 0
    %s14 = scalar_lea.sflag [#allocation5], 1
    %15 = vsyncpa %s14, 0
    %16 = vsyncpa [#allocation8], 0
    %17 = vsyncpa [#allocation6], 0
    %s18 = scalar_lea.sflag [#allocation6], 1
    %19 = vsyncpa %s18, 0
    loop: start=0, step=1, limit=4
    $region2: #{tpu_custom_call.1} parent=1 // loop_pre_header
      _
    $region3: #{tpu_custom_call.1} parent=1 // loop_header
      %s21 = sphi 0, %s25
      %p22 = scmp.ge.s32.totalorder %s21, 4
      %s31 = sphi 0, %s33
      %s34 = sphi 0, %s31
      %s35 = sphi 0, %s34
      %s51 = sphi 0, %s35
      %s55 = sphi 0, %s55
      %s57 = sphi 0, %s55
      %s58 = sphi 0, %s57
      %s72 = sphi 0, %s58
      %s76 = sphi 0, %s76
      %s78 = sphi 0, %s76
      %s79 = sphi 0, %s78
      %s93 = sphi 0, %s79
      %s97 = sphi 0, %s97
      %s99 = sphi 0, %s97
      %s100 = sphi 0, %s99
      %s114 = sphi 0, %s100
      %s118 = sphi 0, %s118
      %s120 = sphi 0, %s118
      %s121 = sphi 0, %s120
      %s135 = sphi 0, %s121
      %s139 = sphi 0, %s139
      %s141 = sphi 0, %s139
      %s142 = sphi 0, %s141
      %s156 = sphi 0, %s142
      %s162 = sphi 0, %s164
      %s165 = sphi 0, %s162
      %s166 = sphi 0, %s165
      %s182 = sphi 0, %s166
    $region4: #{tpu_custom_call.1} parent=1 // loop_header_branch
      %24 = sbr.rel (%p22) target = $region8
    $region5: #{tpu_custom_call.1} parent=1 // loop_body
      %s26 = ssub.s32 %s21, 1
      %s27 = ssub.s32 %s21, 2
      %s28 = sadd.s32 %s21, 1
      %s29 = ssub.s32 %s21, %s28
      %p30 = scmp.eq.s32.totalorder %s29, 0
      %s32 = sadd.s32 %s31, 1
      %s33 = scalar_select %p30, %s31, %s32
      %p36 = pneg %p30
      %p37 = scmp.eq.s32.totalorder %s21, 1
      %p38 = por %p36, %p37
      %p39 = scmp.ne.s32.totalorder %s31, %s34
      %p40 = scmp.eq.s32.totalorder %s21, 0
      %p41 = por %p39, %p40
      %p42 = scmp.ne.s32.totalorder %s31, %s34
      %p43 = scmp.eq.s32.totalorder %s26, 1
      %p44 = por %p42, %p43
      %p45 = scmp.ne.s32.totalorder %s34, %s35
      %p46 = scmp.eq.s32.totalorder %s26, 0
      %p47 = por %p45, %p46
      %p48 = scmp.ne.s32.totalorder %s34, %s35
      %p49 = scmp.eq.s32.totalorder %s27, 1
      %p50 = por %p48, %p49
      %p52 = scmp.ne.s32.totalorder %s35, %s51
      %p53 = scmp.eq.s32.totalorder %s27, 0
      %p54 = por %p52, %p53
      %s56 = sadd.s32 %s55, 1
      %p59 = scmp.eq.s32.totalorder %s21, 1
      %p60 = scmp.ne.s32.totalorder %s55, %s57
      %p61 = scmp.eq.s32.totalorder %s21, 0
      %p62 = por %p60, %p61
      %p63 = scmp.ne.s32.totalorder %s55, %s57
      %p64 = scmp.eq.s32.totalorder %s26, 1
      %p65 = por %p63, %p64
      %p66 = scmp.ne.s32.totalorder %s57, %s58
      %p67 = scmp.eq.s32.totalorder %s26, 0
      %p68 = por %p66, %p67
      %p69 = scmp.ne.s32.totalorder %s57, %s58
      %p70 = scmp.eq.s32.totalorder %s27, 1
      %p71 = por %p69, %p70
      %p73 = scmp.ne.s32.totalorder %s58, %s72
      %p74 = scmp.eq.s32.totalorder %s27, 0
      %p75 = por %p73, %p74
      %s77 = sadd.s32 %s76, 1
      %p80 = scmp.eq.s32.totalorder %s21, 1
      %p81 = scmp.ne.s32.totalorder %s76, %s78
      %p82 = scmp.eq.s32.totalorder %s21, 0
      %p83 = por %p81, %p82
      %p84 = scmp.ne.s32.totalorder %s76, %s78
      %p85 = scmp.eq.s32.totalorder %s26, 1
      %p86 = por %p84, %p85
      %p87 = scmp.ne.s32.totalorder %s78, %s79
      %p88 = scmp.eq.s32.totalorder %s26, 0
      %p89 = por %p87, %p88
      %p90 = scmp.ne.s32.totalorder %s78, %s79
      %p91 = scmp.eq.s32.totalorder %s27, 1
      %p92 = por %p90, %p91
      %p94 = scmp.ne.s32.totalorder %s79, %s93
      %p95 = scmp.eq.s32.totalorder %s27, 0
      %p96 = por %p94, %p95
      %s98 = sadd.s32 %s97, 1
      %p101 = scmp.eq.s32.totalorder %s21, 1
      %p102 = scmp.ne.s32.totalorder %s97, %s99
      %p103 = scmp.eq.s32.totalorder %s21, 0
      %p104 = por %p102, %p103
      %p105 = scmp.ne.s32.totalorder %s97, %s99
      %p106 = scmp.eq.s32.totalorder %s26, 1
      %p107 = por %p105, %p106
      %p108 = scmp.ne.s32.totalorder %s99, %s100
      %p109 = scmp.eq.s32.totalorder %s26, 0
      %p110 = por %p108, %p109
      %p111 = scmp.ne.s32.totalorder %s99, %s100
      %p112 = scmp.eq.s32.totalorder %s27, 1
      %p113 = por %p111, %p112
      %p115 = scmp.ne.s32.totalorder %s100, %s114
      %p116 = scmp.eq.s32.totalorder %s27, 0
      %p117 = por %p115, %p116
      %s119 = sadd.s32 %s118, 1
      %p122 = scmp.eq.s32.totalorder %s21, 1
      %p123 = scmp.ne.s32.totalorder %s118, %s120
      %p124 = scmp.eq.s32.totalorder %s21, 0
      %p125 = por %p123, %p124
      %p126 = scmp.ne.s32.totalorder %s118, %s120
      %p127 = scmp.eq.s32.totalorder %s26, 1
      %p128 = por %p126, %p127
      %p129 = scmp.ne.s32.totalorder %s120, %s121
      %p130 = scmp.eq.s32.totalorder %s26, 0
      %p131 = por %p129, %p130
      %p132 = scmp.ne.s32.totalorder %s120, %s121
      %p133 = scmp.eq.s32.totalorder %s27, 1
      %p134 = por %p132, %p133
      %p136 = scmp.ne.s32.totalorder %s121, %s135
      %p137 = scmp.eq.s32.totalorder %s27, 0
      %p138 = por %p136, %p137
      %s140 = sadd.s32 %s139, 1
      %p143 = scmp.eq.s32.totalorder %s21, 1
      %p144 = scmp.ne.s32.totalorder %s139, %s141
      %p145 = scmp.eq.s32.totalorder %s21, 0
      %p146 = por %p144, %p145
      %p147 = scmp.ne.s32.totalorder %s139, %s141
      %p148 = scmp.eq.s32.totalorder %s26, 1
      %p149 = por %p147, %p148
      %p150 = scmp.ne.s32.totalorder %s141, %s142
      %p151 = scmp.eq.s32.totalorder %s26, 0
      %p152 = por %p150, %p151
      %p153 = scmp.ne.s32.totalorder %s141, %s142
      %p154 = scmp.eq.s32.totalorder %s27, 1
      %p155 = por %p153, %p154
      %p157 = scmp.ne.s32.totalorder %s142, %s156
      %p158 = scmp.eq.s32.totalorder %s27, 0
      %p159 = por %p157, %p158
      %s160 = ssub.s32 %s21, %s28
      %p161 = scmp.eq.s32.totalorder %s160, 0
      %s163 = sadd.s32 %s162, 1
      %s164 = scalar_select %p161, %s162, %s163
      %p167 = pneg %p161
      %p168 = scmp.eq.s32.totalorder %s21, 1
      %p169 = por %p167, %p168
      %p170 = scmp.ne.s32.totalorder %s162, %s165
      %p171 = scmp.eq.s32.totalorder %s21, 0
      %p172 = por %p170, %p171
      %p173 = scmp.ne.s32.totalorder %s162, %s165
      %p174 = scmp.eq.s32.totalorder %s26, 1
      %p175 = por %p173, %p174
      %p176 = scmp.ne.s32.totalorder %s165, %s166
      %p177 = scmp.eq.s32.totalorder %s26, 0
      %p178 = por %p176, %p177
      %p179 = scmp.ne.s32.totalorder %s165, %s166
      %p180 = scmp.eq.s32.totalorder %s27, 1
      %p181 = por %p179, %p180
      %p183 = scmp.ne.s32.totalorder %s166, %s182
      %p184 = scmp.eq.s32.totalorder %s27, 0
      %p185 = por %p183, %p184
      %p186 = scmp.le.s32.totalorder 1, %s21
      %p187 = scmp.lt.s32.totalorder %s21, 3
      %p188 = pnand %p186, %p187
      %p189 = pneg %p188
      // Predicated region
      $region9: #{tpu_custom_call.1} parent=5 // pred_check
        _
      $region10: #{tpu_custom_call.1} parent=5 // pred_check_branch
        %191 = sbr.rel (%p188) target = $region12
      $region11: #{tpu_custom_call.1} parent=5 // pred_region
        %s192 = ssub.s32 %s21, 1
        // Predicated region
        $region13: #{tpu_custom_call.1} parent=11 // pred_check
          %p193 = pneg %p68
        $region14: #{tpu_custom_call.1} parent=11 // pred_check_branch
          %195 = sbr.rel (%p193) target = $region16
        $region15: #{tpu_custom_call.1} parent=11 // pred_region
          %197 = vsyncadd [#allocation8], 0
          %s198 = sshll.u32 %s1, 4
          %s199 = int_to_ptr.hbm [resolvable:$true] %s198
          %s200 = sshll.u32 [#allocation7], 4
          %s201 = int_to_ptr.vmem [resolvable:$true] %s200
          %206 = dma.hbm_to_vmem [thread:$0]  %s199, 2048, %s201, [#allocation8], 128, 128, 8
        $region16: #{tpu_custom_call.1} parent=11 // pred_fallthru
          _
        // Predicated region
        $region17: #{tpu_custom_call.1} parent=11 // pred_check
          %p207 = pneg %p89
        $region18: #{tpu_custom_call.1} parent=11 // pred_check_branch
          %209 = sbr.rel (%p207) target = $region20
        $region19: #{tpu_custom_call.1} parent=11 // pred_region
          _
        $region20: #{tpu_custom_call.1} parent=11 // pred_fallthru
          _
        // Predicated region
        $region21: #{tpu_custom_call.1} parent=11 // pred_check
          %p210 = pneg %p110
        $region22: #{tpu_custom_call.1} parent=11 // pred_check_branch
          %212 = sbr.rel (%p210) target = $region24
        $region23: #{tpu_custom_call.1} parent=11 // pred_region
          _
        $region24: #{tpu_custom_call.1} parent=11 // pred_fallthru
          _
        // Predicated region
        $region25: #{tpu_custom_call.1} parent=11 // pred_check
          %p213 = pneg %p131
        $region26: #{tpu_custom_call.1} parent=11 // pred_check_branch
          %215 = sbr.rel (%p213) target = $region28
        $region27: #{tpu_custom_call.1} parent=11 // pred_region
          _
        $region28: #{tpu_custom_call.1} parent=11 // pred_fallthru
          _
        // Predicated region
        $region29: #{tpu_custom_call.1} parent=11 // pred_check
          %p216 = pneg %p152
        $region30: #{tpu_custom_call.1} parent=11 // pred_check_branch
          %218 = sbr.rel (%p216) target = $region32
        $region31: #{tpu_custom_call.1} parent=11 // pred_region
          _
        $region32: #{tpu_custom_call.1} parent=11 // pred_fallthru
          _
      $region12: #{tpu_custom_call.1} parent=5 // pred_fallthru
        _
      %p219 = scmp.lt.s32.totalorder %s21, 2
      // Predicated region
      $region33: #{tpu_custom_call.1} parent=5 // pred_check
        %p220 = pneg %p219
      $region34: #{tpu_custom_call.1} parent=5 // pred_check_branch
        %222 = sbr.rel (%p220) target = $region36
      $region35: #{tpu_custom_call.1} parent=5 // pred_region
        // Predicated region
        $region37: #{tpu_custom_call.1} parent=35 // pred_check
          %p223 = pneg %p41
        $region38: #{tpu_custom_call.1} parent=35 // pred_check_branch
          %225 = sbr.rel (%p223) target = $region40
        $region39: #{tpu_custom_call.1} parent=35 // pred_region
          %s226 = sand.u32 %s31, 1
          %s227 = scalar_lea.sflag [#allocation5], %s226
          %s228 = sand.u32 %s31, 1
          %s229 = smul.addr %s228, 128
          %s230 = scalar_lea.vmem [#allocation4], %s229
          %s231 = smul.u32 32, %s21
          %s232 = ssub.s32 63, %s231
          %p233 = scmp.lt.s32.totalorder %s232, 32
          %s234 = scalar_select %p233, %s232, 32
          %s235 = smul.u32 4, %s234
          %s236 = ssub.s32 128, %s235
          %s237 = sshll.u32 %s236, 4
          %238 = vsyncadd %s227, %s237
          %p239 = scmp.ne.s32.totalorder 0, %s235
          %s240 = smul.addr %s231, 4
          %s241 = scalar_lea.hbm %s0, %s240
          %s242 = smul.u32 4, %s234
          %s243 = sshll.u32 %s241, 4
          %s244 = int_to_ptr.hbm [resolvable:$true] %s243
          %s245 = sshll.u32 %s230, 4
          %s246 = int_to_ptr.vmem [resolvable:$true] %s245
          %s247 = sshll.u32 %s242, 4
          %251 = dma.hbm_to_vmem [thread:$0]  (%p239), %s244, %s247, %s246, %s227, 64, 64, 4
        $region40: #{tpu_custom_call.1} parent=35 // pred_fallthru
          _
      $region36: #{tpu_custom_call.1} parent=5 // pred_fallthru
        _
      %p252 = scmp.le.s32.totalorder 1, %s21
      %p253 = scmp.lt.s32.totalorder %s21, 3
      %p254 = pnand %p252, %p253
      %p255 = pneg %p254
      // Predicated region
      $region41: #{tpu_custom_call.1} parent=5 // pred_check
        _
      $region42: #{tpu_custom_call.1} parent=5 // pred_check_branch
        %257 = sbr.rel (%p254) target = $region44
      $region43: #{tpu_custom_call.1} parent=5 // pred_region
        %s258 = ssub.s32 %s21, 1
        %s259 = sand.u32 %s34, 1
        %s260 = scalar_lea.sflag [#allocation5], %s259
        %s261 = sand.u32 %s34, 1
        %s262 = smul.addr %s261, 128
        %s263 = scalar_lea.vmem [#allocation4], %s262
        // Predicated region
        $region45: #{tpu_custom_call.1} parent=43 // pred_check
          %p264 = pneg %p47
        $region46: #{tpu_custom_call.1} parent=43 // pred_check_branch
          %266 = sbr.rel (%p264) target = $region48
        $region47: #{tpu_custom_call.1} parent=43 // pred_region
          %268 = dma.done %s260, 2048
        $region48: #{tpu_custom_call.1} parent=43 // pred_fallthru
          _
        // Predicated region
        $region49: #{tpu_custom_call.1} parent=43 // pred_check
          %p269 = pneg %p68
        $region50: #{tpu_custom_call.1} parent=43 // pred_check_branch
          %271 = sbr.rel (%p269) target = $region52
        $region51: #{tpu_custom_call.1} parent=43 // pred_region
          %273 = dma.done [#allocation8], 2048
        $region52: #{tpu_custom_call.1} parent=43 // pred_fallthru
          _
        %s274 = sand.u32 %s34, 1
        %s275 = scalar_lea.sflag [#allocation5], %s274
        %s276 = sand.u32 %s34, 1
        %s277 = smul.addr %s276, 128
        %s278 = scalar_lea.vmem [#allocation4], %s277
        %p279 = pneg %p47
        %p280 = pneg %p44
        %p281 = pneg %p68
        %p282 = pneg %p65
        %p283 = pneg %p89
        %p284 = pneg %p86
        %p285 = pneg %p110
        %p286 = pneg %p107
        %p287 = pneg %p131
        %p288 = pneg %p128
        %p289 = pneg %p152
        %p290 = pneg %p149
        %p291 = pneg %p178
        %p292 = pneg %p175
        %s293 = sand.u32 %s165, 1
        %s294 = scalar_lea.sflag [#allocation6], %s293
        %s295 = sand.u32 %s165, 1
        %s296 = smul.addr %s295, 4
        %s297 = scalar_lea.vmem [#allocation9], %s296
        %s298 = smul.u32 32, %s26
        %s299 = ssub.s32 63, %s298
        %p300 = scmp.lt.s32.totalorder %s299, 32
        %s301 = scalar_select %p300, %s299, 32
        %s302 = smul.u32 4, %s301
        %s303 = smul.u32 2, %s26
        %s304 = sld [smem:[#allocation2]]
        %s305 = sld [smem:[#allocation3]]
        %v306 = vld [vmem:[%s263] sm:$0xf]
        %v307 = vld [vmem:[%s263 + $0x4] sm:$0xf]
        %v308 = vld [vmem:[%s263 + $0x8] sm:$0xf]
        %v309 = vld [vmem:[%s263 + $0xc] sm:$0xf]
        %v310 = vld [vmem:[%s263 + $0x10] sm:$0xf]
        %v311 = vld [vmem:[%s263 + $0x14] sm:$0xf]
        %v312 = vld [vmem:[%s263 + $0x18] sm:$0xf]
        %v313 = vld [vmem:[%s263 + $0x1c] sm:$0xf]
        %v314 = vld [vmem:[%s263 + $0x20] sm:$0xf]
        %v315 = vld [vmem:[%s263 + $0x24] sm:$0xf]
        %v316 = vld [vmem:[%s263 + $0x28] sm:$0xf]
        %v317 = vld [vmem:[%s263 + $0x2c] sm:$0xf]
        %v318 = vld [vmem:[%s263 + $0x30] sm:$0xf]
        %v319 = vld [vmem:[%s263 + $0x34] sm:$0xf]
        %v320 = vld [vmem:[%s263 + $0x38] sm:$0xf]
        %v321 = vld [vmem:[%s263 + $0x3c] sm:$0xf]
        %v322 = vld [vmem:[%s263 + $0x40] sm:$0xf]
        %v323 = vld [vmem:[%s263 + $0x44] sm:$0xf]
        %v324 = vld [vmem:[%s263 + $0x48] sm:$0xf]
        %v325 = vld [vmem:[%s263 + $0x4c] sm:$0xf]
        %v326 = vld [vmem:[%s263 + $0x50] sm:$0xf]
        %v327 = vld [vmem:[%s263 + $0x54] sm:$0xf]
        %v328 = vld [vmem:[%s263 + $0x58] sm:$0xf]
        %v329 = vld [vmem:[%s263 + $0x5c] sm:$0xf]
        %v330 = vld [vmem:[%s263 + $0x60] sm:$0xf]
        %v331 = vld [vmem:[%s263 + $0x64] sm:$0xf]
        %v332 = vld [vmem:[%s263 + $0x68] sm:$0xf]
        %v333 = vld [vmem:[%s263 + $0x6c] sm:$0xf]
        %v334 = vld [vmem:[%s263 + $0x70] sm:$0xf]
        %v335 = vld [vmem:[%s263 + $0x74] sm:$0xf]
        %v336 = vld [vmem:[%s263 + $0x78] sm:$0xf]
        %v337 = vld [vmem:[%s263 + $0x7c] sm:$0xf]
        %v338 = vld [vmem:[#allocation7] sm:$0xff]
        %v339 = vld [vmem:[#allocation7 + $0x8] sm:$0xff]
        %v340 = vld [vmem:[#allocation7 + $0x10] sm:$0xff]
        %v341 = vld [vmem:[#allocation7 + $0x18] sm:$0xff]
        %v342 = vld [vmem:[#allocation7 + $0x20] sm:$0xff]
        %v343 = vld [vmem:[#allocation7 + $0x28] sm:$0xff]
        %v344 = vld [vmem:[#allocation7 + $0x30] sm:$0xff]
        %v345 = vld [vmem:[#allocation7 + $0x38] sm:$0xff]
        %v346 = vld [vmem:[#allocation7 + $0x40] sm:$0xff]
        %v347 = vld [vmem:[#allocation7 + $0x48] sm:$0xff]
        %v348 = vld [vmem:[#allocation7 + $0x50] sm:$0xff]
        %v349 = vld [vmem:[#allocation7 + $0x58] sm:$0xff]
        %v350 = vld [vmem:[#allocation7 + $0x60] sm:$0xff]
        %v351 = vld [vmem:[#allocation7 + $0x68] sm:$0xff]
        %v352 = vld [vmem:[#allocation7 + $0x70] sm:$0xff]
        %v353 = vld [vmem:[#allocation7 + $0x78] sm:$0xff]
        %v354 = vld [vmem:[%s2] sm:$0x3]
        %v356 = vperm.slane %v354, 0
        %v357 = vperm.slane %v354, 1
        %v392 = vunpack.c.l.b16 %v306
        %v393 = vunpack.c.l.b16 %v307
        %v394 = vunpack.c.l.b16 %v308
        %v395 = vunpack.c.l.b16 %v309
        %v396 = vunpack.c.l.b16 %v310
        %v397 = vunpack.c.l.b16 %v311
        %v398 = vunpack.c.l.b16 %v312
        %v399 = vunpack.c.l.b16 %v313
        %v400 = vunpack.c.l.b16 %v314
        %v401 = vunpack.c.l.b16 %v315
        %v402 = vunpack.c.l.b16 %v316
        %v403 = vunpack.c.l.b16 %v317
        %v404 = vunpack.c.l.b16 %v318
        %v405 = vunpack.c.l.b16 %v319
        %v406 = vunpack.c.l.b16 %v320
        %v407 = vunpack.c.l.b16 %v321
        %v408 = vunpack.c.l.b16 %v322
        %v409 = vunpack.c.l.b16 %v323
        %v410 = vunpack.c.l.b16 %v324
        %v411 = vunpack.c.l.b16 %v325
        %v412 = vunpack.c.l.b16 %v326
        %v413 = vunpack.c.l.b16 %v327
        %v414 = vunpack.c.l.b16 %v328
        %v415 = vunpack.c.l.b16 %v329
        %v416 = vunpack.c.l.b16 %v330
        %v417 = vunpack.c.l.b16 %v331
        %v418 = vunpack.c.l.b16 %v332
        %v419 = vunpack.c.l.b16 %v333
        %v420 = vunpack.c.l.b16 %v334
        %v421 = vunpack.c.l.b16 %v335
        %v422 = vunpack.c.l.b16 %v336
        %v423 = vunpack.c.l.b16 %v337
        %v424 = vpack.c.b16 %v393, %v392
        %v425 = vpack.c.b16 %v395, %v394
        %v426 = vpack.c.b16 %v397, %v396
        %v427 = vpack.c.b16 %v399, %v398
        %v428 = vpack.c.b16 %v401, %v400
        %v429 = vpack.c.b16 %v403, %v402
        %v430 = vpack.c.b16 %v405, %v404
        %v431 = vpack.c.b16 %v407, %v406
        %v432 = vpack.c.b16 %v409, %v408
        %v433 = vpack.c.b16 %v411, %v410
        %v434 = vpack.c.b16 %v413, %v412
        %v435 = vpack.c.b16 %v415, %v414
        %v436 = vpack.c.b16 %v417, %v416
        %v437 = vpack.c.b16 %v419, %v418
        %v438 = vpack.c.b16 %v421, %v420
        %v439 = vpack.c.b16 %v423, %v422
        %v472 = vunpack.c.l.b16 %v338
        %v473 = vunpack.c.h.b16 %v338
        %v474 = vunpack.c.l.b16 %v339
        %v475 = vunpack.c.h.b16 %v339
        %v476 = vunpack.c.l.b16 %v340
        %v477 = vunpack.c.h.b16 %v340
        %v478 = vunpack.c.l.b16 %v341
        %v479 = vunpack.c.h.b16 %v341
        %v480 = vunpack.c.l.b16 %v342
        %v481 = vunpack.c.h.b16 %v342
        %v482 = vunpack.c.l.b16 %v343
        %v483 = vunpack.c.h.b16 %v343
        %v484 = vunpack.c.l.b16 %v344
        %v485 = vunpack.c.h.b16 %v344
        %v486 = vunpack.c.l.b16 %v345
        %v487 = vunpack.c.h.b16 %v345
        %v488 = vunpack.c.l.b16 %v346
        %v489 = vunpack.c.h.b16 %v346
        %v490 = vunpack.c.l.b16 %v347
        %v491 = vunpack.c.h.b16 %v347
        %v492 = vunpack.c.l.b16 %v348
        %v493 = vunpack.c.h.b16 %v348
        %v494 = vunpack.c.l.b16 %v349
        %v495 = vunpack.c.h.b16 %v349
        %v496 = vunpack.c.l.b16 %v350
        %v497 = vunpack.c.h.b16 %v350
        %v498 = vunpack.c.l.b16 %v351
        %v499 = vunpack.c.h.b16 %v351
        %v500 = vunpack.c.l.b16 %v352
        %v501 = vunpack.c.h.b16 %v352
        %v502 = vunpack.c.l.b16 %v353
        %v503 = vunpack.c.h.b16 %v353
        %v504 = vpack.c.b16 %v474, %v472
        %v505 = vpack.c.b16 %v475, %v473
        %v506 = vpack.c.b16 %v478, %v476
        %v507 = vpack.c.b16 %v479, %v477
        %v508 = vpack.c.b16 %v482, %v480
        %v509 = vpack.c.b16 %v483, %v481
        %v510 = vpack.c.b16 %v486, %v484
        %v511 = vpack.c.b16 %v487, %v485
        %v512 = vpack.c.b16 %v490, %v488
        %v513 = vpack.c.b16 %v491, %v489
        %v514 = vpack.c.b16 %v494, %v492
        %v515 = vpack.c.b16 %v495, %v493
        %v516 = vpack.c.b16 %v498, %v496
        %v517 = vpack.c.b16 %v499, %v497
        %v518 = vpack.c.b16 %v502, %v500
        %v519 = vpack.c.b16 %v503, %v501
        %536 = vmatpush.bf16.msra.mxu0 %v518
        %537 = vmatpush.bf16.msra.mxu0 %v516
        %538 = vmatpush.bf16.msra.mxu0 %v514
        %539 = vmatpush.bf16.msra.mxu0 %v512
        %540 = vmatpush.bf16.msra.mxu0 %v510
        %541 = vmatpush.bf16.msra.mxu0 %v508
        %542 = vmatpush.bf16.msra.mxu0 %v506
        %543 = vmatpush.bf16.msra.mxu0 %v504
        %544 = vmatmul.bf16.gmra.mxu0 %v424
        %v545 = vpop.f32.mrf.mxu0
        %v546 = vadd.f32 %v356, %v545
        %v547 = vpop.f32.mrf.mxu0
        %v548 = vadd.f32 %v356, %v547
        %549 = vmatmul.bf16.gmra.mxu0 %v425
        %v550 = vpop.f32.mrf.mxu0
        %v551 = vadd.f32 %v356, %v550
        %v552 = vpop.f32.mrf.mxu0
        %v553 = vadd.f32 %v356, %v552
        %554 = vmatmul.bf16.gmra.mxu0 %v426
        %v555 = vpop.f32.mrf.mxu0
        %v556 = vadd.f32 %v356, %v555
        %v557 = vpop.f32.mrf.mxu0
        %v558 = vadd.f32 %v356, %v557
        %559 = vmatmul.bf16.gmra.mxu0 %v427
        %v560 = vpop.f32.mrf.mxu0
        %v561 = vadd.f32 %v356, %v560
        %v562 = vpop.f32.mrf.mxu0
        %v563 = vadd.f32 %v356, %v562
        %564 = vmatmul.bf16.gmra.mxu0 %v428
        %v565 = vpop.f32.mrf.mxu0
        %v566 = vadd.f32 %v356, %v565
        %v567 = vpop.f32.mrf.mxu0
        %v568 = vadd.f32 %v356, %v567
        %569 = vmatmul.bf16.gmra.mxu0 %v429
        %v570 = vpop.f32.mrf.mxu0
        %v571 = vadd.f32 %v356, %v570
        %v572 = vpop.f32.mrf.mxu0
        %v573 = vadd.f32 %v356, %v572
        %574 = vmatmul.bf16.gmra.mxu0 %v430
        %v575 = vpop.f32.mrf.mxu0
        %v576 = vadd.f32 %v356, %v575
        %v577 = vpop.f32.mrf.mxu0
        %v578 = vadd.f32 %v356, %v577
        %579 = vmatmul.bf16.gmra.mxu0 %v431
        %v580 = vpop.f32.mrf.mxu0
        %v581 = vadd.f32 %v356, %v580
        %v582 = vpop.f32.mrf.mxu0
        %v583 = vadd.f32 %v356, %v582
        %584 = vmatmul.bf16.gmra.mxu0 %v432
        %v585 = vpop.f32.mrf.mxu0
        %v586 = vadd.f32 %v356, %v585
        %v587 = vpop.f32.mrf.mxu0
        %v588 = vadd.f32 %v356, %v587
        %589 = vmatmul.bf16.gmra.mxu0 %v433
        %v590 = vpop.f32.mrf.mxu0
        %v591 = vadd.f32 %v356, %v590
        %v592 = vpop.f32.mrf.mxu0
        %v593 = vadd.f32 %v356, %v592
        %594 = vmatmul.bf16.gmra.mxu0 %v434
        %v595 = vpop.f32.mrf.mxu0
        %v596 = vadd.f32 %v356, %v595
        %v597 = vpop.f32.mrf.mxu0
        %v598 = vadd.f32 %v356, %v597
        %599 = vmatmul.bf16.gmra.mxu0 %v435
        %v600 = vpop.f32.mrf.mxu0
        %v601 = vadd.f32 %v356, %v600
        %v602 = vpop.f32.mrf.mxu0
        %v603 = vadd.f32 %v356, %v602
        %604 = vmatmul.bf16.gmra.mxu0 %v436
        %v605 = vpop.f32.mrf.mxu0
        %v606 = vadd.f32 %v356, %v605
        %v607 = vpop.f32.mrf.mxu0
        %v608 = vadd.f32 %v356, %v607
        %609 = vmatmul.bf16.gmra.mxu0 %v437
        %v610 = vpop.f32.mrf.mxu0
        %v611 = vadd.f32 %v356, %v610
        %v612 = vpop.f32.mrf.mxu0
        %v613 = vadd.f32 %v356, %v612
        %614 = vmatmul.bf16.gmra.mxu0 %v438
        %v615 = vpop.f32.mrf.mxu0
        %v616 = vadd.f32 %v356, %v615
        %v617 = vpop.f32.mrf.mxu0
        %v618 = vadd.f32 %v356, %v617
        %619 = vmatmul.bf16.gmra.mxu0 %v439
        %v620 = vpop.f32.mrf.mxu0
        %v621 = vadd.f32 %v356, %v620
        %v622 = vpop.f32.mrf.mxu0
        %v623 = vadd.f32 %v356, %v622
        %624 = vdwg.mxu0
        %625 = vmatpush.bf16.msra.mxu0 %v519
        %626 = vmatpush.bf16.msra.mxu0 %v517
        %627 = vmatpush.bf16.msra.mxu0 %v515
        %628 = vmatpush.bf16.msra.mxu0 %v513
        %629 = vmatpush.bf16.msra.mxu0 %v511
        %630 = vmatpush.bf16.msra.mxu0 %v509
        %631 = vmatpush.bf16.msra.mxu0 %v507
        %632 = vmatpush.bf16.msra.mxu0 %v505
        %633 = vmatmul.bf16.gmra.mxu0 %v424
        %v634 = vpop.f32.mrf.mxu0
        %v635 = vadd.f32 %v357, %v634
        %v636 = vpop.f32.mrf.mxu0
        %v637 = vadd.f32 %v357, %v636
        %638 = vmatmul.bf16.gmra.mxu0 %v425
        %v639 = vpop.f32.mrf.mxu0
        %v640 = vadd.f32 %v357, %v639
        %v641 = vpop.f32.mrf.mxu0
        %v642 = vadd.f32 %v357, %v641
        %643 = vmatmul.bf16.gmra.mxu0 %v426
        %v644 = vpop.f32.mrf.mxu0
        %v645 = vadd.f32 %v357, %v644
        %v646 = vpop.f32.mrf.mxu0
        %v647 = vadd.f32 %v357, %v646
        %648 = vmatmul.bf16.gmra.mxu0 %v427
        %v649 = vpop.f32.mrf.mxu0
        %v650 = vadd.f32 %v357, %v649
        %v651 = vpop.f32.mrf.mxu0
        %v652 = vadd.f32 %v357, %v651
        %653 = vmatmul.bf16.gmra.mxu0 %v428
        %v654 = vpop.f32.mrf.mxu0
        %v655 = vadd.f32 %v357, %v654
        %v656 = vpop.f32.mrf.mxu0
        %v657 = vadd.f32 %v357, %v656
        %658 = vmatmul.bf16.gmra.mxu0 %v429
        %v659 = vpop.f32.mrf.mxu0
        %v660 = vadd.f32 %v357, %v659
        %v661 = vpop.f32.mrf.mxu0
        %v662 = vadd.f32 %v357, %v661
        %663 = vmatmul.bf16.gmra.mxu0 %v430
        %v664 = vpop.f32.mrf.mxu0
        %v665 = vadd.f32 %v357, %v664
        %v666 = vpop.f32.mrf.mxu0
        %v667 = vadd.f32 %v357, %v666
        %668 = vmatmul.bf16.gmra.mxu0 %v431
        %v669 = vpop.f32.mrf.mxu0
        %v670 = vadd.f32 %v357, %v669
        %v671 = vpop.f32.mrf.mxu0
        %v672 = vadd.f32 %v357, %v671
        %673 = vmatmul.bf16.gmra.mxu0 %v432
        %v674 = vpop.f32.mrf.mxu0
        %v675 = vadd.f32 %v357, %v674
        %v676 = vpop.f32.mrf.mxu0
        %v677 = vadd.f32 %v357, %v676
        %678 = vmatmul.bf16.gmra.mxu0 %v433
        %v679 = vpop.f32.mrf.mxu0
        %v680 = vadd.f32 %v357, %v679
        %v681 = vpop.f32.mrf.mxu0
        %v682 = vadd.f32 %v357, %v681
        %683 = vmatmul.bf16.gmra.mxu0 %v434
        %v684 = vpop.f32.mrf.mxu0
        %v685 = vadd.f32 %v357, %v684
        %v686 = vpop.f32.mrf.mxu0
        %v687 = vadd.f32 %v357, %v686
        %688 = vmatmul.bf16.gmra.mxu0 %v435
        %v689 = vpop.f32.mrf.mxu0
        %v690 = vadd.f32 %v357, %v689
        %v691 = vpop.f32.mrf.mxu0
        %v692 = vadd.f32 %v357, %v691
        %693 = vmatmul.bf16.gmra.mxu0 %v436
        %v694 = vpop.f32.mrf.mxu0
        %v695 = vadd.f32 %v357, %v694
        %v696 = vpop.f32.mrf.mxu0
        %v697 = vadd.f32 %v357, %v696
        %698 = vmatmul.bf16.gmra.mxu0 %v437
        %v699 = vpop.f32.mrf.mxu0
        %v700 = vadd.f32 %v357, %v699
        %v701 = vpop.f32.mrf.mxu0
        %v702 = vadd.f32 %v357, %v701
        %703 = vmatmul.bf16.gmra.mxu0 %v438
        %v704 = vpop.f32.mrf.mxu0
        %v705 = vadd.f32 %v357, %v704
        %v706 = vpop.f32.mrf.mxu0
        %v707 = vadd.f32 %v357, %v706
        %708 = vmatmul.bf16.gmra.mxu0 %v439
        %v709 = vpop.f32.mrf.mxu0
        %v710 = vadd.f32 %v357, %v709
        %v711 = vpop.f32.mrf.mxu0
        %v712 = vadd.f32 %v357, %v711
        %713 = vdwg.mxu0
        %vm714 = vcmp.gt.f32.partialorder %v546, 0.0
        %vm715 = vcmp.gt.f32.partialorder %v635, 0.0
        %vm716 = vcmp.gt.f32.partialorder %v548, 0.0
        %vm717 = vcmp.gt.f32.partialorder %v637, 0.0
        %vm718 = vcmp.gt.f32.partialorder %v551, 0.0
        %vm719 = vcmp.gt.f32.partialorder %v640, 0.0
        %vm720 = vcmp.gt.f32.partialorder %v553, 0.0
        %vm721 = vcmp.gt.f32.partialorder %v642, 0.0
        %vm722 = vcmp.gt.f32.partialorder %v556, 0.0
        %vm723 = vcmp.gt.f32.partialorder %v645, 0.0
        %vm724 = vcmp.gt.f32.partialorder %v558, 0.0
        %vm725 = vcmp.gt.f32.partialorder %v647, 0.0
        %vm726 = vcmp.gt.f32.partialorder %v561, 0.0
        %vm727 = vcmp.gt.f32.partialorder %v650, 0.0
        %vm728 = vcmp.gt.f32.partialorder %v563, 0.0
        %vm729 = vcmp.gt.f32.partialorder %v652, 0.0
        %vm730 = vcmp.gt.f32.partialorder %v566, 0.0
        %vm731 = vcmp.gt.f32.partialorder %v655, 0.0
        %vm732 = vcmp.gt.f32.partialorder %v568, 0.0
        %vm733 = vcmp.gt.f32.partialorder %v657, 0.0
        %vm734 = vcmp.gt.f32.partialorder %v571, 0.0
        %vm735 = vcmp.gt.f32.partialorder %v660, 0.0
        %vm736 = vcmp.gt.f32.partialorder %v573, 0.0
        %vm737 = vcmp.gt.f32.partialorder %v662, 0.0
        %vm738 = vcmp.gt.f32.partialorder %v576, 0.0
        %vm739 = vcmp.gt.f32.partialorder %v665, 0.0
        %vm740 = vcmp.gt.f32.partialorder %v578, 0.0
        %vm741 = vcmp.gt.f32.partialorder %v667, 0.0
        %vm742 = vcmp.gt.f32.partialorder %v581, 0.0
        %vm743 = vcmp.gt.f32.partialorder %v670, 0.0
        %vm744 = vcmp.gt.f32.partialorder %v583, 0.0
        %vm745 = vcmp.gt.f32.partialorder %v672, 0.0
        %vm746 = vcmp.gt.f32.partialorder %v586, 0.0
        %vm747 = vcmp.gt.f32.partialorder %v675, 0.0
        %vm748 = vcmp.gt.f32.partialorder %v588, 0.0
        %vm749 = vcmp.gt.f32.partialorder %v677, 0.0
        %vm750 = vcmp.gt.f32.partialorder %v591, 0.0
        %vm751 = vcmp.gt.f32.partialorder %v680, 0.0
        %vm752 = vcmp.gt.f32.partialorder %v593, 0.0
        %vm753 = vcmp.gt.f32.partialorder %v682, 0.0
        %vm754 = vcmp.gt.f32.partialorder %v596, 0.0
        %vm755 = vcmp.gt.f32.partialorder %v685, 0.0
        %vm756 = vcmp.gt.f32.partialorder %v598, 0.0
        %vm757 = vcmp.gt.f32.partialorder %v687, 0.0
        %vm758 = vcmp.gt.f32.partialorder %v601, 0.0
        %vm759 = vcmp.gt.f32.partialorder %v690, 0.0
        %vm760 = vcmp.gt.f32.partialorder %v603, 0.0
        %vm761 = vcmp.gt.f32.partialorder %v692, 0.0
        %vm762 = vcmp.gt.f32.partialorder %v606, 0.0
        %vm763 = vcmp.gt.f32.partialorder %v695, 0.0
        %vm764 = vcmp.gt.f32.partialorder %v608, 0.0
        %vm765 = vcmp.gt.f32.partialorder %v697, 0.0
        %vm766 = vcmp.gt.f32.partialorder %v611, 0.0
        %vm767 = vcmp.gt.f32.partialorder %v700, 0.0
        %vm768 = vcmp.gt.f32.partialorder %v613, 0.0
        %vm769 = vcmp.gt.f32.partialorder %v702, 0.0
        %vm770 = vcmp.gt.f32.partialorder %v616, 0.0
        %vm771 = vcmp.gt.f32.partialorder %v705, 0.0
        %vm772 = vcmp.gt.f32.partialorder %v618, 0.0
        %vm773 = vcmp.gt.f32.partialorder %v707, 0.0
        %vm774 = vcmp.gt.f32.partialorder %v621, 0.0
        %vm775 = vcmp.gt.f32.partialorder %v710, 0.0
        %vm776 = vcmp.gt.f32.partialorder %v623, 0.0
        %vm777 = vcmp.gt.f32.partialorder %v712, 0.0
        %v778 = vstv %s304
        %v779 = vmul.f32 %v778, %v546
        %v780 = vmul.f32 %v778, %v635
        %v781 = vmul.f32 %v778, %v548
        %v782 = vmul.f32 %v778, %v637
        %v783 = vmul.f32 %v778, %v551
        %v784 = vmul.f32 %v778, %v640
        %v785 = vmul.f32 %v778, %v553
        %v786 = vmul.f32 %v778, %v642
        %v787 = vmul.f32 %v778, %v556
        %v788 = vmul.f32 %v778, %v645
        %v789 = vmul.f32 %v778, %v558
        %v790 = vmul.f32 %v778, %v647
        %v791 = vmul.f32 %v778, %v561
        %v792 = vmul.f32 %v778, %v650
        %v793 = vmul.f32 %v778, %v563
        %v794 = vmul.f32 %v778, %v652
        %v795 = vmul.f32 %v778, %v566
        %v796 = vmul.f32 %v778, %v655
        %v797 = vmul.f32 %v778, %v568
        %v798 = vmul.f32 %v778, %v657
        %v799 = vmul.f32 %v778, %v571
        %v800 = vmul.f32 %v778, %v660
        %v801 = vmul.f32 %v778, %v573
        %v802 = vmul.f32 %v778, %v662
        %v803 = vmul.f32 %v778, %v576
        %v804 = vmul.f32 %v778, %v665
        %v805 = vmul.f32 %v778, %v578
        %v806 = vmul.f32 %v778, %v667
        %v807 = vmul.f32 %v778, %v581
        %v808 = vmul.f32 %v778, %v670
        %v809 = vmul.f32 %v778, %v583
        %v810 = vmul.f32 %v778, %v672
        %v811 = vmul.f32 %v778, %v586
        %v812 = vmul.f32 %v778, %v675
        %v813 = vmul.f32 %v778, %v588
        %v814 = vmul.f32 %v778, %v677
        %v815 = vmul.f32 %v778, %v591
        %v816 = vmul.f32 %v778, %v680
        %v817 = vmul.f32 %v778, %v593
        %v818 = vmul.f32 %v778, %v682
        %v819 = vmul.f32 %v778, %v596
        %v820 = vmul.f32 %v778, %v685
        %v821 = vmul.f32 %v778, %v598
        %v822 = vmul.f32 %v778, %v687
        %v823 = vmul.f32 %v778, %v601
        %v824 = vmul.f32 %v778, %v690
        %v825 = vmul.f32 %v778, %v603
        %v826 = vmul.f32 %v778, %v692
        %v827 = vmul.f32 %v778, %v606
        %v828 = vmul.f32 %v778, %v695
        %v829 = vmul.f32 %v778, %v608
        %v830 = vmul.f32 %v778, %v697
        %v831 = vmul.f32 %v778, %v611
        %v832 = vmul.f32 %v778, %v700
        %v833 = vmul.f32 %v778, %v613
        %v834 = vmul.f32 %v778, %v702
        %v835 = vmul.f32 %v778, %v616
        %v836 = vmul.f32 %v778, %v705
        %v837 = vmul.f32 %v778, %v618
        %v838 = vmul.f32 %v778, %v707
        %v839 = vmul.f32 %v778, %v621
        %v840 = vmul.f32 %v778, %v710
        %v841 = vmul.f32 %v778, %v623
        %v842 = vmul.f32 %v778, %v712
        %v843 = vsel %vm714, %v546, %v779
        %v844 = vsel %vm715, %v635, %v780
        %v845 = vsel %vm716, %v548, %v781
        %v846 = vsel %vm717, %v637, %v782
        %v847 = vsel %vm718, %v551, %v783
        %v848 = vsel %vm719, %v640, %v784
        %v849 = vsel %vm720, %v553, %v785
        %v850 = vsel %vm721, %v642, %v786
        %v851 = vsel %vm722, %v556, %v787
        %v852 = vsel %vm723, %v645, %v788
        %v853 = vsel %vm724, %v558, %v789
        %v854 = vsel %vm725, %v647, %v790
        %v855 = vsel %vm726, %v561, %v791
        %v856 = vsel %vm727, %v650, %v792
        %v857 = vsel %vm728, %v563, %v793
        %v858 = vsel %vm729, %v652, %v794
        %v859 = vsel %vm730, %v566, %v795
        %v860 = vsel %vm731, %v655, %v796
        %v861 = vsel %vm732, %v568, %v797
        %v862 = vsel %vm733, %v657, %v798
        %v863 = vsel %vm734, %v571, %v799
        %v864 = vsel %vm735, %v660, %v800
        %v865 = vsel %vm736, %v573, %v801
        %v866 = vsel %vm737, %v662, %v802
        %v867 = vsel %vm738, %v576, %v803
        %v868 = vsel %vm739, %v665, %v804
        %v869 = vsel %vm740, %v578, %v805
        %v870 = vsel %vm741, %v667, %v806
        %v871 = vsel %vm742, %v581, %v807
        %v872 = vsel %vm743, %v670, %v808
        %v873 = vsel %vm744, %v583, %v809
        %v874 = vsel %vm745, %v672, %v810
        %v875 = vsel %vm746, %v586, %v811
        %v876 = vsel %vm747, %v675, %v812
        %v877 = vsel %vm748, %v588, %v813
        %v878 = vsel %vm749, %v677, %v814
        %v879 = vsel %vm750, %v591, %v815
        %v880 = vsel %vm751, %v680, %v816
        %v881 = vsel %vm752, %v593, %v817
        %v882 = vsel %vm753, %v682, %v818
        %v883 = vsel %vm754, %v596, %v819
        %v884 = vsel %vm755, %v685, %v820
        %v885 = vsel %vm756, %v598, %v821
        %v886 = vsel %vm757, %v687, %v822
        %v887 = vsel %vm758, %v601, %v823
        %v888 = vsel %vm759, %v690, %v824
        %v889 = vsel %vm760, %v603, %v825
        %v890 = vsel %vm761, %v692, %v826
        %v891 = vsel %vm762, %v606, %v827
        %v892 = vsel %vm763, %v695, %v828
        %v893 = vsel %vm764, %v608, %v829
        %v894 = vsel %vm765, %v697, %v830
        %v895 = vsel %vm766, %v611, %v831
        %v896 = vsel %vm767, %v700, %v832
        %v897 = vsel %vm768, %v613, %v833
        %v898 = vsel %vm769, %v702, %v834
        %v899 = vsel %vm770, %v616, %v835
        %v900 = vsel %vm771, %v705, %v836
        %v901 = vsel %vm772, %v618, %v837
        %v902 = vsel %vm773, %v707, %v838
        %v903 = vsel %vm774, %v621, %v839
        %v904 = vsel %vm775, %v710, %v840
        %v905 = vsel %vm776, %v623, %v841
        %v906 = vsel %vm777, %v712, %v842
        %v907 = vld [vmem:[%s3] sm:$0xf]
        %v908 = vstv %s305
        %910 = vst [vmem:[#allocation1] ss:$4 sm:$0xff] %v907
        %v911 = vld.sshfl [vmem:[#allocation1] sm:$0xff pattern:$0x73625140]
        %v912 = vld.sshfl [vmem:[#allocation1 + $0x8] sm:$0xff pattern:$0x73625140]
        %915 = vmatpush.xpose.msra.mxu0 %v873
        %916 = vmatpush.xpose.msra.mxu0 %v871
        %917 = vmatpush.xpose.msra.mxu0 %v869
        %918 = vmatpush.xpose.msra.mxu0 %v867
        %919 = vmatpush.xpose.msra.mxu0 %v865
        %920 = vmatpush.xpose.msra.mxu0 %v863
        %921 = vmatpush.xpose.msra.mxu0 %v861
        %922 = vmatpush.xpose.msra.mxu0 %v859
        %923 = vmatpush.xpose.msra.mxu0 %v857
        %924 = vmatpush.xpose.msra.mxu0 %v855
        %925 = vmatpush.xpose.msra.mxu0 %v853
        %926 = vmatpush.xpose.msra.mxu0 %v851
        %927 = vmatpush.xpose.msra.mxu0 %v849
        %928 = vmatpush.xpose.msra.mxu0 %v847
        %929 = vmatpush.xpose.msra.mxu0 %v845
        %930 = vmatpush.xpose.msra.mxu0 %v843
        %931 = vmatmul.f32.gmra.mxu0 %v911
        %v932 = vpop.f32.mrf.mxu0
        %v933 = vadd.f32 %v908, %v932
        %934 = vdwg.mxu0
        %935 = vmatpush.xpose.msra.mxu0 %v874
        %936 = vmatpush.xpose.msra.mxu0 %v872
        %937 = vmatpush.xpose.msra.mxu0 %v870
        %938 = vmatpush.xpose.msra.mxu0 %v868
        %939 = vmatpush.xpose.msra.mxu0 %v866
        %940 = vmatpush.xpose.msra.mxu0 %v864
        %941 = vmatpush.xpose.msra.mxu0 %v862
        %942 = vmatpush.xpose.msra.mxu0 %v860
        %943 = vmatpush.xpose.msra.mxu0 %v858
        %944 = vmatpush.xpose.msra.mxu0 %v856
        %945 = vmatpush.xpose.msra.mxu0 %v854
        %946 = vmatpush.xpose.msra.mxu0 %v852
        %947 = vmatpush.xpose.msra.mxu0 %v850
        %948 = vmatpush.xpose.msra.mxu0 %v848
        %949 = vmatpush.xpose.msra.mxu0 %v846
        %950 = vmatpush.xpose.msra.mxu0 %v844
        %951 = vmatmul.f32.gmra.mxu0 %v912
        %v952 = vpop.f32.mrf.mxu0
        %v953 = vadd.f32 %v933, %v952
        %954 = vdwg.mxu0
        %955 = vmatpush.xpose.msra.mxu0 %v905
        %956 = vmatpush.xpose.msra.mxu0 %v903
        %957 = vmatpush.xpose.msra.mxu0 %v901
        %958 = vmatpush.xpose.msra.mxu0 %v899
        %959 = vmatpush.xpose.msra.mxu0 %v897
        %960 = vmatpush.xpose.msra.mxu0 %v895
        %961 = vmatpush.xpose.msra.mxu0 %v893
        %962 = vmatpush.xpose.msra.mxu0 %v891
        %963 = vmatpush.xpose.msra.mxu0 %v889
        %964 = vmatpush.xpose.msra.mxu0 %v887
        %965 = vmatpush.xpose.msra.mxu0 %v885
        %966 = vmatpush.xpose.msra.mxu0 %v883
        %967 = vmatpush.xpose.msra.mxu0 %v881
        %968 = vmatpush.xpose.msra.mxu0 %v879
        %969 = vmatpush.xpose.msra.mxu0 %v877
        %970 = vmatpush.xpose.msra.mxu0 %v875
        %971 = vmatmul.f32.gmra.mxu0 %v911
        %v972 = vpop.f32.mrf.mxu0
        %v973 = vadd.f32 %v908, %v972
        %974 = vdwg.mxu0
        %975 = vmatpush.xpose.msra.mxu0 %v906
        %976 = vmatpush.xpose.msra.mxu0 %v904
        %977 = vmatpush.xpose.msra.mxu0 %v902
        %978 = vmatpush.xpose.msra.mxu0 %v900
        %979 = vmatpush.xpose.msra.mxu0 %v898
        %980 = vmatpush.xpose.msra.mxu0 %v896
        %981 = vmatpush.xpose.msra.mxu0 %v894
        %982 = vmatpush.xpose.msra.mxu0 %v892
        %983 = vmatpush.xpose.msra.mxu0 %v890
        %984 = vmatpush.xpose.msra.mxu0 %v888
        %985 = vmatpush.xpose.msra.mxu0 %v886
        %986 = vmatpush.xpose.msra.mxu0 %v884
        %987 = vmatpush.xpose.msra.mxu0 %v882
        %988 = vmatpush.xpose.msra.mxu0 %v880
        %989 = vmatpush.xpose.msra.mxu0 %v878
        %990 = vmatpush.xpose.msra.mxu0 %v876
        %991 = vmatmul.f32.gmra.mxu0 %v912
        %v992 = vpop.f32.mrf.mxu0
        %v993 = vadd.f32 %v973, %v992
        %994 = vdwg.mxu0
        %v997 = vrot.slane %v993, 6
        %vm998 = vcmask 1041408
        %v999 = vsel %vm998, %v953, %v997
        %1001 = vst [vmem:[%s297] sm:$0xf] %v999
        %s1002 = sand.u32 %s165, 1
        %s1003 = scalar_lea.sflag [#allocation6], %s1002
        %s1004 = sand.u32 %s165, 1
        %s1005 = smul.addr %s1004, 4
        %s1006 = scalar_lea.vmem [#allocation9], %s1005
        // Predicated region
        $region53: #{tpu_custom_call.1} parent=43 // pred_check
          %p1007 = pneg %p175
        $region54: #{tpu_custom_call.1} parent=43 // pred_check_branch
          %1009 = sbr.rel (%p1007) target = $region56
        $region55: #{tpu_custom_call.1} parent=43 // pred_region
          %s1010 = smul.u32 2, %s26
          %1012 = vsyncadd %s1003, 0
          %s1013 = smul.addr %s1010, 2
          %s1014 = scalar_lea.hbm %s6, %s1013
          %s1016 = sshll.u32 %s1006, 4
          %s1017 = int_to_ptr.vmem [resolvable:$true] %s1016
          %s1018 = sshll.u32 %s1014, 4
          %s1019 = int_to_ptr.hbm [resolvable:$true] %s1018
          %1021 = dma.vmem_to_hbm [thread:$0]  %s1017, 64, %s1019, %s1003
        $region56: #{tpu_custom_call.1} parent=43 // pred_fallthru
          _
      $region44: #{tpu_custom_call.1} parent=5 // pred_fallthru
        _
      %p1022 = scmp.le.s32.totalorder 2, %s21
      // Predicated region
      $region57: #{tpu_custom_call.1} parent=5 // pred_check
        %p1023 = pneg %p1022
      $region58: #{tpu_custom_call.1} parent=5 // pred_check_branch
        %1025 = sbr.rel (%p1023) target = $region60
      $region59: #{tpu_custom_call.1} parent=5 // pred_region
        %s1026 = ssub.s32 %s21, 2
        // Predicated region
        $region61: #{tpu_custom_call.1} parent=59 // pred_check
          %p1027 = pneg %p181
        $region62: #{tpu_custom_call.1} parent=59 // pred_check_branch
          %1029 = sbr.rel (%p1027) target = $region64
        $region63: #{tpu_custom_call.1} parent=59 // pred_region
          %s1030 = sand.u32 %s166, 1
          %s1031 = scalar_lea.sflag [#allocation6], %s1030
          %s1032 = sand.u32 %s166, 1
          %s1033 = smul.addr %s1032, 4
          %s1034 = scalar_lea.vmem [#allocation9], %s1033
          %1036 = dma.done %s1031, 64
        $region64: #{tpu_custom_call.1} parent=59 // pred_fallthru
          _
      $region60: #{tpu_custom_call.1} parent=5 // pred_fallthru
        _
    $region6: #{tpu_custom_call.1} parent=1 // loop_footer
      %s25 = sadd.s32 1, %s21
    $region7: #{tpu_custom_call.1} parent=1 // loop_footer_branch
      %20 = sbr.rel target = $region3
    $region8: #{tpu_custom_call.1} parent=1 // loop_exit
      _
    %1037 = vsyncpa [#allocation5], 1
    %s1038 = scalar_lea.sflag [#allocation5], 1
    %1039 = vsyncpa %s1038, 1
    %1040 = vsyncpa [#allocation8], 1
    %1041 = vsyncpa [#allocation6], 1
    %s1042 = scalar_lea.sflag [#allocation6], 1
    %1043 = vsyncpa %s1042, 1

</llo_original>
